<compile_context>
chip_gen: v5e
topology: v5e:2x2
jax: 0.10.0
libtpu: 0.0.40
codegen_flags: <defaults>
</compile_context>

<pallas_src>
import functools

import jax
import jax.numpy as jnp
from jax import lax
from jax.experimental import pallas as pl
from jax.experimental.pallas import tpu as pltpu


_VMEM_LIMIT = 48 * 1024 * 1024   # < 64 MiB physical on v7x, ample headroom everywhere


def _round_up(x, m):
    return ((x + m - 1) // m) * m


# ------------------------------ Pallas kernels --------------------------------

def _mm_single_kernel(x_ref, w_ref, b_ref, o_ref, *, relu):
    """Single K-step: o = x @ w + b (+ReLU). No accumulator scratch needed."""
    y = jnp.dot(x_ref[...], w_ref[...], preferred_element_type=jnp.float32)
    y = y + b_ref[...]
    if relu:
        y = jnp.maximum(y, 0.0)
    o_ref[...] = y.astype(o_ref.dtype)


def _mm_single_res_kernel(x_ref, w_ref, b_ref, r_ref, o_ref, *, relu):
    """Single K-step with fused residual add (+ReLU) epilogue."""
    y = jnp.dot(x_ref[...], w_ref[...], preferred_element_type=jnp.float32)
    y = y + b_ref[...] + r_ref[...].astype(jnp.float32)
    if relu:
        y = jnp.maximum(y, 0.0)
    o_ref[...] = y.astype(o_ref.dtype)


def _mm_multi_kernel(x_ref, w_ref, b_ref, o_ref, acc_ref, *, relu):
    """Multi K-step (weight streams): accumulate in f32 VMEM scratch."""
    @pl.when(pl.program_id(2) == 0)
    def _():
        acc_ref[...] = jnp.zeros_like(acc_ref)

    acc_ref[...] += jnp.dot(x_ref[...], w_ref[...],
                            preferred_element_type=jnp.float32)

    @pl.when(pl.program_id(2) == pl.num_programs(2) - 1)
    def _():
        y = acc_ref[...] + b_ref[...]
        if relu:
            y = jnp.maximum(y, 0.0)
        o_ref[...] = y.astype(o_ref.dtype)


def _mm_multi_res_kernel(x_ref, w_ref, b_ref, r_ref, o_ref, acc_ref, *, relu):
    """Multi K-step with fused residual add (+ReLU) in the last-step epilogue."""
    @pl.when(pl.program_id(2) == 0)
    def _():
        acc_ref[...] = jnp.zeros_like(acc_ref)

    acc_ref[...] += jnp.dot(x_ref[...], w_ref[...],
                            preferred_element_type=jnp.float32)

    @pl.when(pl.program_id(2) == pl.num_programs(2) - 1)
    def _():
        y = acc_ref[...] + b_ref[...] + r_ref[...].astype(jnp.float32)
        if relu:
            y = jnp.maximum(y, 0.0)
        o_ref[...] = y.astype(o_ref.dtype)


def _max_tree_kernel(*refs):
    """Elementwise max over the 9 shifted maxpool views (all lane-dense bf16)."""
    in_refs, o_ref = refs[:-1], refs[-1]
    m = in_refs[0][...]
    for r in in_refs[1:]:
        m = jnp.maximum(m, r[...])
    o_ref[...] = m


def _head_kernel(x_ref, w1_ref, b1_ref, w2_ref, b2_ref, o_ref):
    """Fused global-avg-pool -> fc1 -> ReLU -> fc2 (dropouts are identity)."""
    feat = jnp.mean(x_ref[...].astype(jnp.float32), axis=1)          # (Nb, C)
    h = jnp.dot(feat.astype(jnp.bfloat16), w1_ref[...],
                preferred_element_type=jnp.float32) + b1_ref[...]
    h = jnp.maximum(h, 0.0)
    y = jnp.dot(h.astype(jnp.bfloat16), w2_ref[...],
                preferred_element_type=jnp.float32) + b2_ref[...]
    o_ref[...] = y


# ------------------------------ kernel wrappers --------------------------------

def matmul_bias(x, w_p, b_p, n_out, *, relu=False, residual=None):
    """y = x @ w_p + b_p (+residual)(+ReLU), bf16 out.

    x        : (M, K) (cast to bf16 here)
    w_p      : (Kp, Np) bf16, pre-padded to multiples of 128, BN scale folded
    b_p      : (1, Np) f32, pre-padded
    residual : optional (M, n_out) bf16 -> fused add (+ReLU) epilogue
    returns  : (M, n_out) bf16
    """
    M, K = x.shape
    Kp, Np = w_p.shape

    tm = min(128, _round_up(M, 16))     # small M tiles for the tiny-M deep layers
    tn = min(Np, 512)                   # single N pass on single-TC chips
    # Split K for the weight-DMA-bound layer3/4 convs (K = 2304 / 4608) so the
    # weight tile streams and overlaps with MXU work; full-K otherwise.
    tk = 1152 if (Kp > 1152 and Kp % 1152 == 0) else Kp
    Mp = _round_up(M, tm)
    nk = Kp // tk

    xp = jnp.pad(x.astype(jnp.bfloat16), ((0, Mp - M), (0, Kp - K)))
    grid = (Mp // tm, Np // tn, nk)

    x_spec = pl.BlockSpec((tm, tk), lambda i, j, k: (i, k))
    w_spec = pl.BlockSpec((tk, tn), lambda i, j, k: (k, j))
    b_spec = pl.BlockSpec((1, tn), lambda i, j, k: (0, j))
    o_spec = pl.BlockSpec((tm, tn), lambda i, j, k: (i, j))
    cparams = pltpu.CompilerParams(
        dimension_semantics=("parallel", "parallel", "arbitrary"),
        vmem_limit_bytes=_VMEM_LIMIT)
    scratch = [] if nk == 1 else [pltpu.VMEM((tm, tn), jnp.float32)]

    in_specs = [x_spec, w_spec, b_spec]
    args = [xp, w_p, b_p]
    if residual is not None:
        rp = jnp.pad(residual.astype(jnp.bfloat16),
                     ((0, Mp - M), (0, Np - n_out)))
        in_specs.append(pl.BlockSpec((tm, tn), lambda i, j, k: (i, j)))
        args.append(rp)
        kernel = _mm_single_res_kernel if nk == 1 else _mm_multi_res_kernel
    else:
        kernel = _mm_single_kernel if nk == 1 else _mm_multi_kernel

    out = pl.pallas_call(
        functools.partial(kernel, relu=relu),
        out_shape=jax.ShapeDtypeStruct((Mp, Np), jnp.bfloat16),
        grid_spec=pltpu.PrefetchScalarGridSpec(
            num_scalar_prefetch=0, grid=grid,
            in_specs=in_specs, out_specs=o_spec, scratch_shapes=scratch),
        compiler_params=cparams,
    )(*args)
    return out[:M, :n_out]


def conv2d_bn_act(x, cp, *, relu, residual=None):
    """x: NHWC bf16.  cp: prepped conv dict (bf16 scale-folded weight matrix).

    im2col (bf16) + fused matmul / BN-bias / ReLU (+residual) Pallas kernel.
    """
    N, H, W, Cin = x.shape
    KH, KW, Cout = cp['kh'], cp['kw'], cp['cout']
    stride, padding = cp['stride'], cp['padding']
    OH = (H + 2 * padding - KH) // stride + 1
    OW = (W + 2 * padding - KW) // stride + 1

    xb = x.astype(jnp.bfloat16)
    xp = jnp.pad(xb, ((0, 0), (padding, padding), (padding, padding), (0, 0)))
    # TODO(synk): fold im2col into the matmul grid (one k step per (kh,kw) tap
    # via index_map) to delete this XLA-side gather; kept here since every cols
    # tensor at these shapes is < 1 MB in bf16.
    cols = []
    for kh in range(KH):
        for kw in range(KW):
            s = lax.slice(
                xp, (0, kh, kw, 0),
                (N, kh + (OH - 1) * stride + 1, kw + (OW - 1) * stride + 1, Cin),
                (1, stride, stride, 1))
            cols.append(s)
    cols = jnp.concatenate(cols, axis=-1).reshape(N * OH * OW, KH * KW * Cin)

    res2 = None
    if residual is not None:
        res2 = residual.reshape(N * OH * OW, Cout)

    y = matmul_bias(cols, cp['w'], cp['b'], Cout, relu=relu, residual=res2)
    return y.reshape(N, OH, OW, Cout)


def maxpool2d(x, kernel=3, stride=2, padding=1):
    """3x3/s2 maxpool: 9 shifted lane-dense bf16 views -> one elementwise-max kernel."""
    N, H, W, C = x.shape
    OH = (H + 2 * padding - kernel) // stride + 1
    OW = (W + 2 * padding - kernel) // stride + 1
    neg = float(jnp.finfo(x.dtype).min)
    xp = jnp.pad(x, ((0, 0), (padding, padding), (padding, padding), (0, 0)),
                 constant_values=neg)
    views = []
    for kh in range(kernel):
        for kw in range(kernel):
            s = lax.slice(
                xp, (0, kh, kw, 0),
                (N, kh + (OH - 1) * stride + 1, kw + (OW - 1) * stride + 1, C),
                (1, stride, stride, 1))
            views.append(s.reshape(N * OH, OW * C))   # lane-dense: OW*C >= 128
    out = pl.pallas_call(
        _max_tree_kernel,
        out_shape=jax.ShapeDtypeStruct((N * OH, OW * C), x.dtype),
        compiler_params=pltpu.CompilerParams(vmem_limit_bytes=_VMEM_LIMIT),
    )(*views)
    return out.reshape(N, OH, OW, C)


def head_forward(x, params):
    """Fused GAP + Dropout(id) + Linear(512,128) + ReLU + Dropout(id) + Linear(128,1)."""
    N, H, W, C = x.shape
    Nb = _round_up(max(N, 16), 16)          # bf16 sublane packing = 16 rows
    x3 = jnp.pad(x.reshape(N, H * W, C).astype(jnp.bfloat16),
                 ((0, Nb - N), (0, 0), (0, 0)))
    out = pl.pallas_call(
        _head_kernel,
        out_shape=jax.ShapeDtypeStruct((Nb, 128), jnp.float32),
        compiler_params=pltpu.CompilerParams(vmem_limit_bytes=_VMEM_LIMIT),
    )(x3, params['fc1_w'], params['fc1_b'], params['fc2_w'], params['fc2_b'])
    return out[:N, :1]


# ------------------------ parameters (deterministic) --------------------------

def _prep_conv(w_oihw, scale, bias, stride, padding):
    """PyTorch OIHW conv weight + folded-BN affine -> matmul-ready bf16 matrix."""
    Cout, Cin, KH, KW = w_oihw.shape
    K = KH * KW * Cin
    wmat = jnp.transpose(w_oihw, (2, 3, 1, 0)).reshape(K, Cout)   # (kh,kw,cin) x Cout
    wmat = wmat * scale[None, :]                                   # fold BN scale
    Kp, Np = _round_up(K, 128), _round_up(Cout, 128)
    w_p = jnp.pad(wmat, ((0, Kp - K), (0, Np - Cout))).astype(jnp.bfloat16)
    b_p = jnp.pad(bias.reshape(1, Cout).astype(jnp.float32),
                  ((0, 0), (0, Np - Cout)))
    # TODO(synk): on v7x the MXU takes fp8 (e4m3) natively; a v7x-only fp8 weight
    # path with per-channel scale folded here would halve weight HBM traffic.
    return {'w': w_p, 'b': b_p, 'cout': Cout, 'kh': KH, 'kw': KW,
            'stride': stride, 'padding': padding}


def init_params(key):
    keys = iter(jax.random.split(key, 256))

    def nk():
        return next(keys)

    def conv_w(cout, cin, kh, kw):
        fan_in = cin * kh * kw
        return jax.random.normal(nk(), (cout, cin, kh, kw), jnp.float32) * \
            jnp.sqrt(2.0 / fan_in)

    def bn_fold(c, eps=1e-5):
        gamma = 1.0 + 0.1 * jax.random.normal(nk(), (c,), jnp.float32)
        beta = 0.1 * jax.random.normal(nk(), (c,), jnp.float32)
        mean = 0.1 * jax.random.normal(nk(), (c,), jnp.float32)
        var = 1.0 + 0.1 * jnp.abs(jax.random.normal(nk(), (c,), jnp.float32))
        scale = gamma / jnp.sqrt(var + eps)
        bias = beta - mean * scale
        return scale, bias

    params = {}
    # conv1: emulate the module's init — mean over the 3 RGB channels of a base
    # 7x7 weight, copied into both of the 2 input channels.
    base_w = conv_w(64, 3, 7, 7)
    wmean = jnp.mean(base_w, axis=1, keepdims=True)          # (64, 1, 7, 7)
    conv1_w = jnp.concatenate([wmean, wmean], 1)             # (64, 2, 7, 7)
    s1, b1 = bn_fold(64)
    params['conv1'] = _prep_conv(conv1_w, s1, b1, stride=2, padding=3)

    def make_block(cin, cout, stride, downsample):
        w1 = conv_w(cout, cin, 3, 3)
        s1_, b1_ = bn_fold(cout)
        w2 = conv_w(cout, cout, 3, 3)
        s2_, b2_ = bn_fold(cout)
        blk = {'conv1': _prep_conv(w1, s1_, b1_, stride, 1),
               'conv2': _prep_conv(w2, s2_, b2_, 1, 1)}
        if downsample:
            wd = conv_w(cout, cin, 1, 1)
            sd, bd = bn_fold(cout)
            blk['down'] = _prep_conv(wd, sd, bd, stride, 0)
        return blk

    cfg = {
        'layer1': [(64, 64, 1, False), (64, 64, 1, False)],
        'layer2': [(64, 128, 2, True), (128, 128, 1, False)],
        'layer3': [(128, 256, 2, True), (256, 256, 1, False)],
        'layer4': [(256, 512, 2, True), (512, 512, 1, False)],
    }
    for name, blocks in cfg.items():
        params[name] = [make_block(*b) for b in blocks]

    # FC head: Linear(512,128) -> ReLU -> Linear(128,1); weights pre-cast/padded.
    fc1_w = jax.random.normal(nk(), (512, 128), jnp.float32) * jnp.sqrt(1.0 / 512)
    fc2_w = jax.random.normal(nk(), (128, 1), jnp.float32) * jnp.sqrt(1.0 / 128)
    params['fc1_w'] = fc1_w.astype(jnp.bfloat16)                          # (512, 128)
    params['fc1_b'] = jnp.zeros((1, 128), jnp.float32)
    params['fc2_w'] = jnp.pad(fc2_w, ((0, 0), (0, 127))).astype(jnp.bfloat16)  # (128,128)
    params['fc2_b'] = jnp.zeros((1, 128), jnp.float32)
    return params


# -------------------------------- forward pass --------------------------------

def basic_block_forward(x, blk):
    out = conv2d_bn_act(x, blk['conv1'], relu=True)
    if 'down' in blk:
        identity = conv2d_bn_act(x, blk['down'], relu=False)
    else:
        identity = x
    # second conv: BN bias + residual add + ReLU all fused in the matmul epilogue
    return conv2d_bn_act(out, blk['conv2'], relu=True, residual=identity)


def tumor_growth_predictor_forward(params, x_nchw):
    # input follows the PyTorch NCHW convention; flip to NHWC (bf16) for TPU compute
    x = jnp.transpose(x_nchw, (0, 2, 3, 1)).astype(jnp.bfloat16)
    x = conv2d_bn_act(x, params['conv1'], relu=True)
    x = maxpool2d(x, kernel=3, stride=2, padding=1)
    for name in ('layer1', 'layer2', 'layer3', 'layer4'):
        for blk in params[name]:
            x = basic_block_forward(x, blk)
    # TODO(synk): nn.Dropout(0.5)/nn.Dropout(0.3) are identity (eval-mode).
    # TODO(synk): remaining lever is fusing each BasicBlock (or the whole net,
    # ~22 MB of bf16 weights fit VMEM) into one pallas_call with cross-call
    # weight prefetch; kept per-conv calls here for simplicity/robustness.
    return head_forward(x, params)  # (N, 1)


if __name__ == "__main__":
    key = jax.random.PRNGKey(0)
    pkey, xkey = jax.random.split(key)
    params = init_params(pkey)
    # batch=2, in_channels=2 (per module), spatial 32x32 (NCHW like PyTorch)
    x = jax.random.normal(xkey, (2, 2, 32, 32), jnp.float32)
    out = tumor_growth_predictor_forward(params, x)
    out = jax.block_until_ready(out)
    assert out.shape == (2, 1)
    print("KERNEL_OK")
</pallas_src>

<mosaic_0001>
module attributes {stable_mosaic.version = 11 : i64} {
  func.func @_mm_single_kernel(%arg0: i32, %arg1: i32, %arg2: i32, %arg3: memref<128x128xbf16, #tpu.memory_space<vmem>>, %arg4: memref<128x128xbf16, #tpu.memory_space<vmem>>, %arg5: memref<1x128xf32, #tpu.memory_space<vmem>>, %arg6: memref<128x128xbf16, #tpu.memory_space<vmem>>) attributes {dimension_semantics = [#tpu.dimension_semantics<parallel>, #tpu.dimension_semantics<parallel>, #tpu.dimension_semantics<arbitrary>], iteration_bounds = array<i64: 4, 1, 1>, scalar_prefetch = 0 : i64, scratch_operands = 0 : i64, tpu.core_type = #tpu.core_type<tc>, window_params = [{transform_indices = @transform_0, window_bounds = array<i64: 128, 128>}, {transform_indices = @transform_1, window_bounds = array<i64: 128, 128>}, {transform_indices = @transform_2, window_bounds = array<i64: 1, 128>}, {transform_indices = @transform_3, window_bounds = array<i64: 128, 128>}]} {
    %c0 = arith.constant 0 : index
    %c0_0 = arith.constant 0 : index
    %0 = vector.load %arg3[%c0, %c0_0] : memref<128x128xbf16, #tpu.memory_space<vmem>>, vector<128x128xbf16>
    %c0_1 = arith.constant 0 : index
    %c0_2 = arith.constant 0 : index
    %1 = vector.load %arg4[%c0_1, %c0_2] : memref<128x128xbf16, #tpu.memory_space<vmem>>, vector<128x128xbf16>
    %cst = arith.constant dense<0.000000e+00> : vector<128x128xf32>
    %2 = tpu.matmul %0, %1, %cst {dimension_numbers = #tpu.dot_dimension_numbers<[1], [0], [0], [1], [0, 0, 1, 1], [], []>} : vector<128x128xbf16>, vector<128x128xbf16>, vector<128x128xf32> -> vector<128x128xf32>
    %c0_3 = arith.constant 0 : index
    %c0_4 = arith.constant 0 : index
    %3 = vector.load %arg5[%c0_3, %c0_4] : memref<1x128xf32, #tpu.memory_space<vmem>>, vector<1x128xf32>
    %4 = vector.broadcast %3 : vector<1x128xf32> to vector<128x128xf32>
    %5 = arith.addf %2, %4 : vector<128x128xf32>
    %cst_5 = arith.constant 0.000000e+00 : f32
    %6 = vector.broadcast %cst_5 : f32 to vector<128x128xf32>
    %7 = arith.maximumf %5, %6 : vector<128x128xf32>
    %8 = arith.truncf %7 : vector<128x128xf32> to vector<128x128xbf16>
    %c0_6 = arith.constant 0 : index
    %c0_7 = arith.constant 0 : index
    %9 = vector.load %arg6[%c0_6, %c0_7] : memref<128x128xbf16, #tpu.memory_space<vmem>>, vector<128x128xbf16>
    tpu.vector_store %arg6[%c0_6, %c0_7], %8 {strides = array<i32>} : memref<128x128xbf16, #tpu.memory_space<vmem>>, vector<128x128xbf16>,
    return
  }
  func.func @transform_0(%arg0: i32, %arg1: i32, %arg2: i32) -> (i32, i32) {
    %c0_i32 = arith.constant 0 : i32
    return %arg0, %arg2 : i32, i32
  }
  func.func @transform_1(%arg0: i32, %arg1: i32, %arg2: i32) -> (i32, i32) {
    %c0_i32 = arith.constant 0 : i32
    return %arg2, %arg1 : i32, i32
  }
  func.func @transform_2(%arg0: i32, %arg1: i32, %arg2: i32) -> (i32, i32) {
    %c0_i32 = arith.constant 0 : i32
    %c0_i32_0 = arith.constant 0 : i32
    return %c0_i32, %arg1 : i32, i32
  }
  func.func @transform_3(%arg0: i32, %arg1: i32, %arg2: i32) -> (i32, i32) {
    %c0_i32 = arith.constant 0 : i32
    return %arg0, %arg1 : i32, i32
  }
}

</mosaic_0001>

<llo_original>
// kernel: tpu_custom_call.1
$region0: #{tpu_custom_call.1}
  #allocation0 [shape = 'u32[]', space=smem, size = 0x4, offset = 0x4, fixed_abs, tag = 'smem constant byte address 0x4 - core index']
  #allocation1 [shape = 'u32[72,128]{1,0:T(1,128)}', space=vmem, size = 0x9000, scoped, tag = 'internal scratch']
  %s0 = inlined_call_operand.hbm [shape: bf16[512,128], index: 0, kind: input, shape index: {}]
  %s1 = inlined_call_operand.hbm [shape: bf16[128,128], index: 1, kind: input, shape index: {}]
  %s2 = inlined_call_operand.vmem [shape: f32[1,128], index: 2, kind: input, shape index: {}]
  %s3 = inlined_call_operand.hbm [shape: bf16[512,128], index: 3, kind: output, shape index: {}]
  %s4 = sld [smem:[#allocation0]]
  $region53: #{tpu_custom_call.1} parent=0
    _
  %s6 = ssub.s32 1, %s4
  %s7 = scalar_select 0, %s6, %s4
  $region1: #{tpu_custom_call.1} parent=0
    #allocation2 [shape = 'u8[65536]{0}', space=vmem, size = 0x10000, scoped, tag = 'input window, operand 0']
    #allocation3 [shape = 's32[2]{0}', space=sflag, size = 0x8, scoped, tag = 'scoped memory for tpu_custom_call.1']
    #allocation4 [shape = 's32[2]{0}', space=sflag, size = 0x8, scoped, tag = 'scoped memory for tpu_custom_call.1']
    #allocation5 [shape = 'u8[32768]{0}', space=vmem, size = 0x8000, scoped, tag = 'input window, operand 1, single buffered']
    #allocation6 [shape = 's32[1]{0}', space=sflag, size = 0x4, scoped, tag = 'scoped memory for tpu_custom_call.1']
    #allocation7 [shape = 'u8[65536]{0}', space=vmem, size = 0x10000, scoped, tag = 'output window, operand 0']
    %8 = vsyncpa [#allocation3], 0
    %s9 = scalar_lea.sflag [#allocation3], 1
    %10 = vsyncpa %s9, 0
    %11 = vsyncpa [#allocation6], 0
    %12 = vsyncpa [#allocation4], 0
    %s13 = scalar_lea.sflag [#allocation4], 1
    %14 = vsyncpa %s13, 0
    loop: start=0, step=1, limit=6
    $region2: #{tpu_custom_call.1} parent=1 // loop_pre_header
      _
    $region3: #{tpu_custom_call.1} parent=1 // loop_header
      %s16 = sphi 0, %s20
      %p17 = scmp.ge.s32.totalorder %s16, 6
      %s23 = sphi 0, %s42
      %s24 = sphi 0, %s38
      %s25 = sphi 0, %s34
      %s26 = sphi 0, %s23
      %s27 = sphi 0, %s24
      %s28 = sphi 0, %s25
      %s29 = sphi 0, %s26
      %s30 = sphi 0, %s27
      %s31 = sphi 0, %s28
      %s47 = sphi 0, %s49
      %s50 = sphi 0, %s47
      %s51 = sphi 0, %s50
      %s67 = sphi 0, %s51
      %s75 = sphi 0, %s77
      %s78 = sphi 0, %s75
      %s79 = sphi 0, %s78
      %s95 = sphi 0, %s79
      %s101 = sphi 0, %s103
      %s104 = sphi 0, %s101
      %s105 = sphi 0, %s104
      %s121 = sphi 0, %s105
      %s129 = sphi 0, %s131
      %s132 = sphi 0, %s129
      %s133 = sphi 0, %s132
      %s149 = sphi 0, %s133
    $region4: #{tpu_custom_call.1} parent=1 // loop_header_branch
      %19 = sbr.rel (%p17) target = $region8
    $region5: #{tpu_custom_call.1} parent=1 // loop_body
      %s21 = ssub.s32 %s16, 1
      %s22 = ssub.s32 %s16, 2
      %s32 = sadd.s32 1, %s25
      %p33 = scmp.ge.s32.totalorder %s32, 1
      %s34 = scalar_select %p33, 0, %s32
      %s35 = sadd.s32 1, %s24
      %s36 = scalar_select %p33, %s35, %s24
      %p37 = scmp.ge.s32.totalorder %s36, 1
      %s38 = scalar_select %p37, 0, %s36
      %s39 = sadd.s32 1, %s23
      %s40 = scalar_select %p37, %s39, %s23
      %p41 = scmp.ge.s32.totalorder %s40, 4
      %s42 = scalar_select %p41, 0, %s40
      %s43 = ssub.s32 %s23, %s42
      %s44 = ssub.s32 %s25, %s34
      %s45 = sor.u32 %s43, %s44
      %p46 = scmp.eq.s32.totalorder %s45, 0
      %s48 = sadd.s32 %s47, 1
      %s49 = scalar_select %p46, %s47, %s48
      %p52 = pneg %p46
      %p53 = scmp.eq.s32.totalorder %s16, 3
      %p54 = por %p52, %p53
      %p55 = scmp.ne.s32.totalorder %s47, %s50
      %p56 = scmp.eq.s32.totalorder %s16, 0
      %p57 = por %p55, %p56
      %p58 = scmp.ne.s32.totalorder %s47, %s50
      %p59 = scmp.eq.s32.totalorder %s21, 3
      %p60 = por %p58, %p59
      %p61 = scmp.ne.s32.totalorder %s50, %s51
      %p62 = scmp.eq.s32.totalorder %s21, 0
      %p63 = por %p61, %p62
      %p64 = scmp.ne.s32.totalorder %s50, %s51
      %p65 = scmp.eq.s32.totalorder %s22, 3
      %p66 = por %p64, %p65
      %p68 = scmp.ne.s32.totalorder %s51, %s67
      %p69 = scmp.eq.s32.totalorder %s22, 0
      %p70 = por %p68, %p69
      %s71 = ssub.s32 %s25, %s34
      %s72 = ssub.s32 %s24, %s38
      %s73 = sor.u32 %s71, %s72
      %p74 = scmp.eq.s32.totalorder %s73, 0
      %s76 = sadd.s32 %s75, 1
      %s77 = scalar_select %p74, %s75, %s76
      %p80 = pneg %p74
      %p81 = scmp.eq.s32.totalorder %s16, 3
      %p82 = por %p80, %p81
      %p83 = scmp.ne.s32.totalorder %s75, %s78
      %p84 = scmp.eq.s32.totalorder %s16, 0
      %p85 = por %p83, %p84
      %p86 = scmp.ne.s32.totalorder %s75, %s78
      %p87 = scmp.eq.s32.totalorder %s21, 3
      %p88 = por %p86, %p87
      %p89 = scmp.ne.s32.totalorder %s78, %s79
      %p90 = scmp.eq.s32.totalorder %s21, 0
      %p91 = por %p89, %p90
      %p92 = scmp.ne.s32.totalorder %s78, %s79
      %p93 = scmp.eq.s32.totalorder %s22, 3
      %p94 = por %p92, %p93
      %p96 = scmp.ne.s32.totalorder %s79, %s95
      %p97 = scmp.eq.s32.totalorder %s22, 0
      %p98 = por %p96, %p97
      %s99 = ssub.s32 %s24, %s38
      %p100 = scmp.eq.s32.totalorder %s99, 0
      %s102 = sadd.s32 %s101, 1
      %s103 = scalar_select %p100, %s101, %s102
      %p106 = pneg %p100
      %p107 = scmp.eq.s32.totalorder %s16, 3
      %p108 = por %p106, %p107
      %p109 = scmp.ne.s32.totalorder %s101, %s104
      %p110 = scmp.eq.s32.totalorder %s16, 0
      %p111 = por %p109, %p110
      %p112 = scmp.ne.s32.totalorder %s101, %s104
      %p113 = scmp.eq.s32.totalorder %s21, 3
      %p114 = por %p112, %p113
      %p115 = scmp.ne.s32.totalorder %s104, %s105
      %p116 = scmp.eq.s32.totalorder %s21, 0
      %p117 = por %p115, %p116
      %p118 = scmp.ne.s32.totalorder %s104, %s105
      %p119 = scmp.eq.s32.totalorder %s22, 3
      %p120 = por %p118, %p119
      %p122 = scmp.ne.s32.totalorder %s105, %s121
      %p123 = scmp.eq.s32.totalorder %s22, 0
      %p124 = por %p122, %p123
      %s125 = ssub.s32 %s23, %s42
      %s126 = ssub.s32 %s24, %s38
      %s127 = sor.u32 %s125, %s126
      %p128 = scmp.eq.s32.totalorder %s127, 0
      %s130 = sadd.s32 %s129, 1
      %s131 = scalar_select %p128, %s129, %s130
      %p134 = pneg %p128
      %p135 = scmp.eq.s32.totalorder %s16, 3
      %p136 = por %p134, %p135
      %p137 = scmp.ne.s32.totalorder %s129, %s132
      %p138 = scmp.eq.s32.totalorder %s16, 0
      %p139 = por %p137, %p138
      %p140 = scmp.ne.s32.totalorder %s129, %s132
      %p141 = scmp.eq.s32.totalorder %s21, 3
      %p142 = por %p140, %p141
      %p143 = scmp.ne.s32.totalorder %s132, %s133
      %p144 = scmp.eq.s32.totalorder %s21, 0
      %p145 = por %p143, %p144
      %p146 = scmp.ne.s32.totalorder %s132, %s133
      %p147 = scmp.eq.s32.totalorder %s22, 3
      %p148 = por %p146, %p147
      %p150 = scmp.ne.s32.totalorder %s133, %s149
      %p151 = scmp.eq.s32.totalorder %s22, 0
      %p152 = por %p150, %p151
      %p153 = scmp.le.s32.totalorder 1, %s16
      %p154 = scmp.lt.s32.totalorder %s16, 5
      %p155 = pnand %p153, %p154
      %p156 = pneg %p155
      // Predicated region
      $region9: #{tpu_custom_call.1} parent=5 // pred_check
        _
      $region10: #{tpu_custom_call.1} parent=5 // pred_check_branch
        %158 = sbr.rel (%p155) target = $region12
      $region11: #{tpu_custom_call.1} parent=5 // pred_region
        %s159 = ssub.s32 %s16, 1
        // Predicated region
        $region13: #{tpu_custom_call.1} parent=11 // pred_check
          %p160 = pneg %p91
        $region14: #{tpu_custom_call.1} parent=11 // pred_check_branch
          %162 = sbr.rel (%p160) target = $region16
        $region15: #{tpu_custom_call.1} parent=11 // pred_region
          %s163 = smul.u32 16, %s28
          %165 = vsyncadd [#allocation6], 0
          %s166 = sadd.s32 %s27, %s163
          %s167 = smul.addr %s166, 4
          %s168 = scalar_lea.hbm %s1, %s167
          %s169 = sshll.u32 %s168, 4
          %s170 = int_to_ptr.hbm [resolvable:$true] %s169
          %s171 = sshll.u32 [#allocation5], 4
          %s172 = int_to_ptr.vmem [resolvable:$true] %s171
          %177 = dma.hbm_to_vmem [thread:$0]  %s170, 1024, %s172, [#allocation6], 64, 64, 4
        $region16: #{tpu_custom_call.1} parent=11 // pred_fallthru
          _
        // Predicated region
        $region17: #{tpu_custom_call.1} parent=11 // pred_check
          %p178 = pneg %p117
        $region18: #{tpu_custom_call.1} parent=11 // pred_check_branch
          %180 = sbr.rel (%p178) target = $region20
        $region19: #{tpu_custom_call.1} parent=11 // pred_region
          %p181 = scmp.lt.s32.totalorder %s27, 0
          %s182 = scalar_select %p181, %s27, 0
          %s183 = scalar_lea.vmem %s2, %s182
        $region20: #{tpu_custom_call.1} parent=11 // pred_fallthru
          _
      $region12: #{tpu_custom_call.1} parent=5 // pred_fallthru
        _
      %p184 = scmp.lt.s32.totalorder %s16, 4
      // Predicated region
      $region21: #{tpu_custom_call.1} parent=5 // pred_check
        %p185 = pneg %p184
      $region22: #{tpu_custom_call.1} parent=5 // pred_check_branch
        %187 = sbr.rel (%p185) target = $region24
      $region23: #{tpu_custom_call.1} parent=5 // pred_region
        // Predicated region
        $region25: #{tpu_custom_call.1} parent=23 // pred_check
          %p188 = pneg %p57
        $region26: #{tpu_custom_call.1} parent=23 // pred_check_branch
          %190 = sbr.rel (%p188) target = $region28
        $region27: #{tpu_custom_call.1} parent=23 // pred_region
          %s191 = sand.u32 %s47, 1
          %s192 = scalar_lea.sflag [#allocation3], %s191
          %s193 = sand.u32 %s47, 1
          %s194 = smul.addr %s193, 64
          %s195 = scalar_lea.vmem [#allocation2], %s194
          %s196 = smul.u32 16, %s23
          %198 = vsyncadd %s192, 0
          %s199 = sadd.s32 %s25, %s196
          %s200 = smul.addr %s199, 4
          %s201 = scalar_lea.hbm %s0, %s200
          %s202 = sshll.u32 %s201, 4
          %s203 = int_to_ptr.hbm [resolvable:$true] %s202
          %s204 = sshll.u32 %s195, 4
          %s205 = int_to_ptr.vmem [resolvable:$true] %s204
          %210 = dma.hbm_to_vmem [thread:$0]  %s203, 1024, %s205, %s192, 64, 64, 4
        $region28: #{tpu_custom_call.1} parent=23 // pred_fallthru
          _
      $region24: #{tpu_custom_call.1} parent=5 // pred_fallthru
        _
      %p211 = scmp.le.s32.totalorder 1, %s16
      %p212 = scmp.lt.s32.totalorder %s16, 5
      %p213 = pnand %p211, %p212
      %p214 = pneg %p213
      // Predicated region
      $region29: #{tpu_custom_call.1} parent=5 // pred_check
        _
      $region30: #{tpu_custom_call.1} parent=5 // pred_check_branch
        %216 = sbr.rel (%p213) target = $region32
      $region31: #{tpu_custom_call.1} parent=5 // pred_region
        %s217 = ssub.s32 %s16, 1
        %s218 = sand.u32 %s50, 1
        %s219 = scalar_lea.sflag [#allocation3], %s218
        %s220 = sand.u32 %s50, 1
        %s221 = smul.addr %s220, 64
        %s222 = scalar_lea.vmem [#allocation2], %s221
        // Predicated region
        $region33: #{tpu_custom_call.1} parent=31 // pred_check
          %p223 = pneg %p63
        $region34: #{tpu_custom_call.1} parent=31 // pred_check_branch
          %225 = sbr.rel (%p223) target = $region36
        $region35: #{tpu_custom_call.1} parent=31 // pred_region
          %227 = dma.done %s219, 1024
        $region36: #{tpu_custom_call.1} parent=31 // pred_fallthru
          _
        // Predicated region
        $region37: #{tpu_custom_call.1} parent=31 // pred_check
          %p228 = pneg %p91
        $region38: #{tpu_custom_call.1} parent=31 // pred_check_branch
          %230 = sbr.rel (%p228) target = $region40
        $region39: #{tpu_custom_call.1} parent=31 // pred_region
          %232 = dma.done [#allocation6], 1024
        $region40: #{tpu_custom_call.1} parent=31 // pred_fallthru
          _
        %s233 = sand.u32 %s50, 1
        %s234 = scalar_lea.sflag [#allocation3], %s233
        %s235 = sand.u32 %s50, 1
        %s236 = smul.addr %s235, 64
        %s237 = scalar_lea.vmem [#allocation2], %s236
        %p238 = pneg %p63
        %p239 = pneg %p60
        %p240 = pneg %p91
        %p241 = pneg %p88
        %p242 = scmp.lt.s32.totalorder %s27, 0
        %s243 = scalar_select %p242, %s27, 0
        %s244 = scalar_lea.vmem %s2, %s243
        %p245 = pneg %p117
        %p246 = pneg %p114
        %p247 = pneg %p145
        %p248 = pneg %p142
        %s249 = sand.u32 %s132, 1
        %s250 = scalar_lea.sflag [#allocation4], %s249
        %s251 = sand.u32 %s132, 1
        %s252 = smul.addr %s251, 64
        %s253 = scalar_lea.vmem [#allocation7], %s252
        %s254 = smul.u32 16, %s26
        %s255 = smul.u32 16, %s28
        %p256 = scmp.lt.s32.totalorder %s27, 0
        %s257 = scalar_select %p256, %s27, 0
        %s258 = scalar_lea.vmem %s2, %s257
        %s259 = smul.u32 16, %s26
        %v260 = vld [vmem:[%s222] sm:$0xf]
        %v261 = vld [vmem:[%s222 + $0x4] sm:$0xf]
        %v262 = vld [vmem:[%s222 + $0x8] sm:$0xf]
        %v263 = vld [vmem:[%s222 + $0xc] sm:$0xf]
        %v264 = vld [vmem:[%s222 + $0x10] sm:$0xf]
        %v265 = vld [vmem:[%s222 + $0x14] sm:$0xf]
        %v266 = vld [vmem:[%s222 + $0x18] sm:$0xf]
        %v267 = vld [vmem:[%s222 + $0x1c] sm:$0xf]
        %v268 = vld [vmem:[%s222 + $0x20] sm:$0xf]
        %v269 = vld [vmem:[%s222 + $0x24] sm:$0xf]
        %v270 = vld [vmem:[%s222 + $0x28] sm:$0xf]
        %v271 = vld [vmem:[%s222 + $0x2c] sm:$0xf]
        %v272 = vld [vmem:[%s222 + $0x30] sm:$0xf]
        %v273 = vld [vmem:[%s222 + $0x34] sm:$0xf]
        %v274 = vld [vmem:[%s222 + $0x38] sm:$0xf]
        %v275 = vld [vmem:[%s222 + $0x3c] sm:$0xf]
        %v276 = vld [vmem:[#allocation5] sm:$0xf]
        %v277 = vld [vmem:[#allocation5 + $0x4] sm:$0xf]
        %v278 = vld [vmem:[#allocation5 + $0x8] sm:$0xf]
        %v279 = vld [vmem:[#allocation5 + $0xc] sm:$0xf]
        %v280 = vld [vmem:[#allocation5 + $0x10] sm:$0xf]
        %v281 = vld [vmem:[#allocation5 + $0x14] sm:$0xf]
        %v282 = vld [vmem:[#allocation5 + $0x18] sm:$0xf]
        %v283 = vld [vmem:[#allocation5 + $0x1c] sm:$0xf]
        %v284 = vld [vmem:[#allocation5 + $0x20] sm:$0xf]
        %v285 = vld [vmem:[#allocation5 + $0x24] sm:$0xf]
        %v286 = vld [vmem:[#allocation5 + $0x28] sm:$0xf]
        %v287 = vld [vmem:[#allocation5 + $0x2c] sm:$0xf]
        %v288 = vld [vmem:[#allocation5 + $0x30] sm:$0xf]
        %v289 = vld [vmem:[#allocation5 + $0x34] sm:$0xf]
        %v290 = vld [vmem:[#allocation5 + $0x38] sm:$0xf]
        %v291 = vld [vmem:[#allocation5 + $0x3c] sm:$0xf]
        %v292 = vld [vmem:[%s258] sm:$0x1]
        %v294 = vperm.slane %v292, 0
        %v312 = vunpack.c.l.b16 %v260
        %v313 = vunpack.c.l.b16 %v261
        %v314 = vunpack.c.l.b16 %v262
        %v315 = vunpack.c.l.b16 %v263
        %v316 = vunpack.c.l.b16 %v264
        %v317 = vunpack.c.l.b16 %v265
        %v318 = vunpack.c.l.b16 %v266
        %v319 = vunpack.c.l.b16 %v267
        %v320 = vunpack.c.l.b16 %v268
        %v321 = vunpack.c.l.b16 %v269
        %v322 = vunpack.c.l.b16 %v270
        %v323 = vunpack.c.l.b16 %v271
        %v324 = vunpack.c.l.b16 %v272
        %v325 = vunpack.c.l.b16 %v273
        %v326 = vunpack.c.l.b16 %v274
        %v327 = vunpack.c.l.b16 %v275
        %v328 = vpack.c.b16 %v313, %v312
        %v329 = vpack.c.b16 %v315, %v314
        %v330 = vpack.c.b16 %v317, %v316
        %v331 = vpack.c.b16 %v319, %v318
        %v332 = vpack.c.b16 %v321, %v320
        %v333 = vpack.c.b16 %v323, %v322
        %v334 = vpack.c.b16 %v325, %v324
        %v335 = vpack.c.b16 %v327, %v326
        %v360 = vunpack.c.l.b16 %v276
        %v361 = vunpack.c.l.b16 %v277
        %v362 = vunpack.c.l.b16 %v278
        %v363 = vunpack.c.l.b16 %v279
        %v364 = vunpack.c.l.b16 %v280
        %v365 = vunpack.c.l.b16 %v281
        %v366 = vunpack.c.l.b16 %v282
        %v367 = vunpack.c.l.b16 %v283
        %v368 = vunpack.c.l.b16 %v284
        %v369 = vunpack.c.l.b16 %v285
        %v370 = vunpack.c.l.b16 %v286
        %v371 = vunpack.c.l.b16 %v287
        %v372 = vunpack.c.l.b16 %v288
        %v373 = vunpack.c.l.b16 %v289
        %v374 = vunpack.c.l.b16 %v290
        %v375 = vunpack.c.l.b16 %v291
        %v376 = vpack.c.b16 %v361, %v360
        %v377 = vpack.c.b16 %v363, %v362
        %v378 = vpack.c.b16 %v365, %v364
        %v379 = vpack.c.b16 %v367, %v366
        %v380 = vpack.c.b16 %v369, %v368
        %v381 = vpack.c.b16 %v371, %v370
        %v382 = vpack.c.b16 %v373, %v372
        %v383 = vpack.c.b16 %v375, %v374
        %392 = vmatpush.bf16.msra.mxu0 %v383
        %393 = vmatpush.bf16.msra.mxu0 %v382
        %394 = vmatpush.bf16.msra.mxu0 %v381
        %395 = vmatpush.bf16.msra.mxu0 %v380
        %396 = vmatpush.bf16.msra.mxu0 %v379
        %397 = vmatpush.bf16.msra.mxu0 %v378
        %398 = vmatpush.bf16.msra.mxu0 %v377
        %399 = vmatpush.bf16.msra.mxu0 %v376
        %400 = vmatmul.bf16.gmra.mxu0 %v328
        %v401 = vpop.f32.mrf.mxu0
        %v402 = vadd.f32 %v294, %v401
        %v403 = vpop.f32.mrf.mxu0
        %v404 = vadd.f32 %v294, %v403
        %405 = vmatmul.bf16.gmra.mxu0 %v329
        %v406 = vpop.f32.mrf.mxu0
        %v407 = vadd.f32 %v294, %v406
        %v408 = vpop.f32.mrf.mxu0
        %v409 = vadd.f32 %v294, %v408
        %410 = vmatmul.bf16.gmra.mxu0 %v330
        %v411 = vpop.f32.mrf.mxu0
        %v412 = vadd.f32 %v294, %v411
        %v413 = vpop.f32.mrf.mxu0
        %v414 = vadd.f32 %v294, %v413
        %415 = vmatmul.bf16.gmra.mxu0 %v331
        %v416 = vpop.f32.mrf.mxu0
        %v417 = vadd.f32 %v294, %v416
        %v418 = vpop.f32.mrf.mxu0
        %v419 = vadd.f32 %v294, %v418
        %420 = vmatmul.bf16.gmra.mxu0 %v332
        %v421 = vpop.f32.mrf.mxu0
        %v422 = vadd.f32 %v294, %v421
        %v423 = vpop.f32.mrf.mxu0
        %v424 = vadd.f32 %v294, %v423
        %425 = vmatmul.bf16.gmra.mxu0 %v333
        %v426 = vpop.f32.mrf.mxu0
        %v427 = vadd.f32 %v294, %v426
        %v428 = vpop.f32.mrf.mxu0
        %v429 = vadd.f32 %v294, %v428
        %430 = vmatmul.bf16.gmra.mxu0 %v334
        %v431 = vpop.f32.mrf.mxu0
        %v432 = vadd.f32 %v294, %v431
        %v433 = vpop.f32.mrf.mxu0
        %v434 = vadd.f32 %v294, %v433
        %435 = vmatmul.bf16.gmra.mxu0 %v335
        %v436 = vpop.f32.mrf.mxu0
        %v437 = vadd.f32 %v294, %v436
        %v438 = vpop.f32.mrf.mxu0
        %v439 = vadd.f32 %v294, %v438
        %440 = vdwg.mxu0
        %v441 = vmax.f32 %v402, 0.0
        %v442 = vmax.f32 %v404, 0.0
        %v443 = vmax.f32 %v407, 0.0
        %v444 = vmax.f32 %v409, 0.0
        %v445 = vmax.f32 %v412, 0.0
        %v446 = vmax.f32 %v414, 0.0
        %v447 = vmax.f32 %v417, 0.0
        %v448 = vmax.f32 %v419, 0.0
        %v449 = vmax.f32 %v422, 0.0
        %v450 = vmax.f32 %v424, 0.0
        %v451 = vmax.f32 %v427, 0.0
        %v452 = vmax.f32 %v429, 0.0
        %v453 = vmax.f32 %v432, 0.0
        %v454 = vmax.f32 %v434, 0.0
        %v455 = vmax.f32 %v437, 0.0
        %v456 = vmax.f32 %v439, 0.0
        %v457 = vpack.c.bf16 %v441, %v441
        %v458 = vpack.c.bf16 %v442, %v442
        %v459 = vpack.c.bf16 %v443, %v443
        %v460 = vpack.c.bf16 %v444, %v444
        %v461 = vpack.c.bf16 %v445, %v445
        %v462 = vpack.c.bf16 %v446, %v446
        %v463 = vpack.c.bf16 %v447, %v447
        %v464 = vpack.c.bf16 %v448, %v448
        %v465 = vpack.c.bf16 %v449, %v449
        %v466 = vpack.c.bf16 %v450, %v450
        %v467 = vpack.c.bf16 %v451, %v451
        %v468 = vpack.c.bf16 %v452, %v452
        %v469 = vpack.c.bf16 %v453, %v453
        %v470 = vpack.c.bf16 %v454, %v454
        %v471 = vpack.c.bf16 %v455, %v455
        %v472 = vpack.c.bf16 %v456, %v456
        %473 = vst [vmem:[%s253] sm:$0xf] %v457
        %474 = vst [vmem:[%s253 + $0x4] sm:$0xf] %v458
        %475 = vst [vmem:[%s253 + $0x8] sm:$0xf] %v459
        %476 = vst [vmem:[%s253 + $0xc] sm:$0xf] %v460
        %477 = vst [vmem:[%s253 + $0x10] sm:$0xf] %v461
        %478 = vst [vmem:[%s253 + $0x14] sm:$0xf] %v462
        %479 = vst [vmem:[%s253 + $0x18] sm:$0xf] %v463
        %480 = vst [vmem:[%s253 + $0x1c] sm:$0xf] %v464
        %481 = vst [vmem:[%s253 + $0x20] sm:$0xf] %v465
        %482 = vst [vmem:[%s253 + $0x24] sm:$0xf] %v466
        %483 = vst [vmem:[%s253 + $0x28] sm:$0xf] %v467
        %484 = vst [vmem:[%s253 + $0x2c] sm:$0xf] %v468
        %485 = vst [vmem:[%s253 + $0x30] sm:$0xf] %v469
        %486 = vst [vmem:[%s253 + $0x34] sm:$0xf] %v470
        %487 = vst [vmem:[%s253 + $0x38] sm:$0xf] %v471
        %488 = vst [vmem:[%s253 + $0x3c] sm:$0xf] %v472
        %s489 = sand.u32 %s132, 1
        %s490 = scalar_lea.sflag [#allocation4], %s489
        %s491 = sand.u32 %s132, 1
        %s492 = smul.addr %s491, 64
        %s493 = scalar_lea.vmem [#allocation7], %s492
        // Predicated region
        $region41: #{tpu_custom_call.1} parent=31 // pred_check
          %p494 = pneg %p142
        $region42: #{tpu_custom_call.1} parent=31 // pred_check_branch
          %496 = sbr.rel (%p494) target = $region44
        $region43: #{tpu_custom_call.1} parent=31 // pred_region
          %s497 = smul.u32 16, %s26
          %499 = vsyncadd %s490, 0
          %s500 = sadd.s32 %s27, %s497
          %s501 = smul.addr %s500, 4
          %s502 = scalar_lea.hbm %s3, %s501
          %s503 = sshll.u32 %s493, 4
          %s504 = int_to_ptr.vmem [resolvable:$true] %s503
          %s505 = sshll.u32 %s502, 4
          %s506 = int_to_ptr.hbm [resolvable:$true] %s505
          %511 = dma.vmem_to_hbm [thread:$0]  %s504, 1024, %s506, %s490, 64, 64, 4
        $region44: #{tpu_custom_call.1} parent=31 // pred_fallthru
          _
      $region32: #{tpu_custom_call.1} parent=5 // pred_fallthru
        _
      %p512 = scmp.le.s32.totalorder 2, %s16
      // Predicated region
      $region45: #{tpu_custom_call.1} parent=5 // pred_check
        %p513 = pneg %p512
      $region46: #{tpu_custom_call.1} parent=5 // pred_check_branch
        %515 = sbr.rel (%p513) target = $region48
      $region47: #{tpu_custom_call.1} parent=5 // pred_region
        %s516 = ssub.s32 %s16, 2
        // Predicated region
        $region49: #{tpu_custom_call.1} parent=47 // pred_check
          %p517 = pneg %p148
        $region50: #{tpu_custom_call.1} parent=47 // pred_check_branch
          %519 = sbr.rel (%p517) target = $region52
        $region51: #{tpu_custom_call.1} parent=47 // pred_region
          %s520 = sand.u32 %s133, 1
          %s521 = scalar_lea.sflag [#allocation4], %s520
          %s522 = sand.u32 %s133, 1
          %s523 = smul.addr %s522, 64
          %s524 = scalar_lea.vmem [#allocation7], %s523
          %526 = dma.done %s521, 1024
        $region52: #{tpu_custom_call.1} parent=47 // pred_fallthru
          _
      $region48: #{tpu_custom_call.1} parent=5 // pred_fallthru
        _
    $region6: #{tpu_custom_call.1} parent=1 // loop_footer
      %s20 = sadd.s32 1, %s16
    $region7: #{tpu_custom_call.1} parent=1 // loop_footer_branch
      %15 = sbr.rel target = $region3
    $region8: #{tpu_custom_call.1} parent=1 // loop_exit
      _
    %527 = vsyncpa [#allocation3], 1
    %s528 = scalar_lea.sflag [#allocation3], 1
    %529 = vsyncpa %s528, 1
    %530 = vsyncpa [#allocation6], 1
    %531 = vsyncpa [#allocation4], 1
    %s532 = scalar_lea.sflag [#allocation4], 1
    %533 = vsyncpa %s532, 1

</llo_original>
